<compile_context>
chip_gen: v7x
topology: tpu7x:2x2x1
jax: 0.10.0
libtpu: 0.0.40
codegen_flags: <defaults>
</compile_context>

<pallas_src>
import jax
import jax.numpy as jnp
from jax import lax
from jax.experimental import pallas as pl
from jax.experimental.pallas import tpu as pltpu


def _make_conv_relu_kernel(H, W, Cin, Cout, K, pad, P):
    S = H * W
    CK = Cin * K * K

    def kernel(x_ref, w_ref, b_ref, o_ref, xp_ref, cols_ref):
        # x_ref   : (1, Cin, S)      flattened NCHW input, one batch element
        # w_ref   : (Cout, CK)       weight, column index = (kh*K + kw)*Cin + c
        # b_ref   : (Cout, 1)        bias (broadcasts over lanes)
        # o_ref   : (1, Cout, S)     flattened NCHW output
        # xp_ref  : (Cin, S + 2P)    scratch: flat input with zero halo
        # cols_ref: (CK, S)          scratch: im2col matrix

        # Flat zero halo: any tap offset dh*W+dw that runs off the top/bottom
        # of the image lands in the zero region, so no row masks are needed.
        xp_ref[...] = jnp.zeros_like(xp_ref)
        xp_ref[:, P:P + S] = x_ref[0]                       # lane-aligned store

        # Column index (j = s mod W) of every output pixel, used to mask the
        # taps that would otherwise wrap across image rows at the left/right
        # edges.  Computed once, reused for all taps.
        jcol = lax.broadcasted_iota(jnp.int32, (Cin, S), 1) % W

        # Build the (K*K*Cin, S) im2col matrix from statically shifted views.
        for kh in range(K):
            dh = kh - pad
            for kw in range(K):
                dw = kw - pad
                delta = dh * W + dw
                tap = xp_ref[:, P + delta:P + delta + S]    # (Cin, S)
                if dw < 0:
                    tap = jnp.where(jcol >= -dw, tap, 0.0)
                elif dw > 0:
                    tap = jnp.where(jcol < W - dw, tap, 0.0)
                t = kh * K + kw
                cols_ref[t * Cin:(t + 1) * Cin, :] = tap

        # Single fused MXU contraction over all taps and input channels,
        # producing the lane-dense (Cout, S) tile; bias + ReLU fused.
        acc = jnp.dot(w_ref[...], cols_ref[...],
                      preferred_element_type=jnp.float32)   # (Cout, S)
        acc = acc + b_ref[...]
        out = jnp.maximum(acc, 0.0)
        o_ref[...] = out.reshape(1, Cout, S).astype(o_ref.dtype)

    return kernel


def basic_block_forward(x_nchw, w_oihw, bias, *, ksize=3, stride=1, pad=1):
    """Forward pass of BasicBlock (Conv2d + ReLU), NCHW in / NCHW out."""
    N, Cin, H, W = x_nchw.shape
    Cout = w_oihw.shape[0]
    K = ksize
    assert stride == 1 and K == 2 * pad + 1, (
        "kernel is specialized to the module defaults: stride=1, 'same' padding")

    S = H * W
    CK = Cin * K * K
    # Flat halo width: must cover the largest tap offset pad*(W+1); rounded up
    # to a lane multiple so the interior store into the scratch is lane-aligned.
    P = ((pad * (W + 1) + 127) // 128) * 128

    # Free, contiguous reshapes -- no activation transposes, no HBM pad.
    x_flat = x_nchw.reshape(N, Cin, S)
    # Tiny parameter re-layout: (Cout,Cin,K,K) -> (Cout, K*K*Cin) with column
    # index (kh*K + kw)*Cin + c, matching the im2col row order in the kernel.
    w2d = jnp.transpose(w_oihw, (0, 2, 3, 1)).reshape(Cout, CK)
    b2d = bias.reshape(Cout, 1)

    kernel = _make_conv_relu_kernel(H, W, Cin, Cout, K, pad, P)

    cost = pl.CostEstimate(
        flops=2 * N * S * K * K * Cin * Cout,
        transcendentals=0,
        bytes_accessed=4 * (x_flat.size + w2d.size + b2d.size + N * Cout * S))

    out_flat = pl.pallas_call(
        kernel,
        out_shape=jax.ShapeDtypeStruct((N, Cout, S), x_nchw.dtype),
        grid_spec=pltpu.PrefetchScalarGridSpec(
            num_scalar_prefetch=0,
            grid=(N,),
            in_specs=[
                pl.BlockSpec((1, Cin, S), lambda n: (n, 0, 0)),
                pl.BlockSpec((Cout, CK), lambda n: (0, 0)),
                pl.BlockSpec((Cout, 1), lambda n: (0, 0)),
            ],
            out_specs=pl.BlockSpec((1, Cout, S), lambda n: (n, 0, 0)),
            scratch_shapes=[
                pltpu.VMEM((Cin, S + 2 * P), jnp.float32),   # haloed flat input
                pltpu.VMEM((CK, S), jnp.float32),            # im2col matrix
            ],
        ),
        compiler_params=pltpu.CompilerParams(
            dimension_semantics=("parallel",)),
        cost_estimate=cost,
    )(x_flat, w2d, b2d)

    return out_flat.reshape(N, Cout, H, W)


def _reference_forward(x_nchw, w_oihw, bias):
    """Pure-JAX reference (lax conv) for correctness checking."""
    out = lax.conv_general_dilated(
        x_nchw, w_oihw, window_strides=(1, 1), padding=((1, 1), (1, 1)),
        dimension_numbers=("NCHW", "OIHW", "NCHW"),
        precision=lax.Precision.HIGHEST)
    out = out + bias.reshape(1, -1, 1, 1)
    return jnp.maximum(out, 0.0)


if __name__ == "__main__":
    # BasicBlock(in_channels=4, out_channels=8, ksize=3, stride=1, pad=1)
    N, Cin, Cout, H, W, K = 2, 4, 8, 16, 16, 3

    key = jax.random.PRNGKey(0)
    kx, kw, kb = jax.random.split(key, 3)
    x = jax.random.normal(kx, (N, Cin, H, W), dtype=jnp.float32)
    w = jax.random.normal(kw, (Cout, Cin, K, K), dtype=jnp.float32) * 0.1
    b = jax.random.normal(kb, (Cout,), dtype=jnp.float32) * 0.1

    out = jax.block_until_ready(
        basic_block_forward(x, w, b, ksize=K, stride=1, pad=1))
    ref = jax.block_until_ready(_reference_forward(x, w, b))

    assert out.shape == (N, Cout, H, W)
    err = float(jnp.max(jnp.abs(out - ref)))
    assert err < 2e-3, f"mismatch vs reference: max abs err {err}"

    print("KERNEL_OK")
</pallas_src>

<mosaic_0001>
module attributes {stable_mosaic.version = 11 : i64} {
  func.func @kernel(%arg0: i32, %arg1: memref<1x4x256xf32, #tpu.memory_space<vmem>>, %arg2: memref<8x36xf32, #tpu.memory_space<vmem>>, %arg3: memref<8x1xf32, #tpu.memory_space<vmem>>, %arg4: memref<1x8x256xf32, #tpu.memory_space<vmem>>, %arg5: memref<4x512xf32, #tpu.memory_space<vmem>>, %arg6: memref<36x256xf32, #tpu.memory_space<vmem>>) attributes {dimension_semantics = [#tpu.dimension_semantics<parallel>], iteration_bounds = array<i64: 2>, scalar_prefetch = 0 : i64, scratch_operands = 2 : i64, tpu.core_type = #tpu.core_type<tc>, window_params = [{transform_indices = @transform_0, window_bounds = array<i64: 1, 4, 256>}, {pipeline_mode = #tpu.pipeline_mode<synchronous>, transform_indices = @transform_1, window_bounds = array<i64: 8, 36>}, {pipeline_mode = #tpu.pipeline_mode<synchronous>, transform_indices = @transform_2, window_bounds = array<i64: 8, 1>}, {transform_indices = @transform_3, window_bounds = array<i64: 1, 8, 256>}]} {
    %cst = arith.constant 0.000000e+00 : f32
    %0 = vector.broadcast %cst : f32 to vector<4x512xf32>
    %c0 = arith.constant 0 : index
    %c0_0 = arith.constant 0 : index
    %1 = vector.load %arg5[%c0, %c0_0] : memref<4x512xf32, #tpu.memory_space<vmem>>, vector<4x512xf32>
    tpu.vector_store %arg5[%c0, %c0_0], %0 {strides = array<i32>} : memref<4x512xf32, #tpu.memory_space<vmem>>, vector<4x512xf32>,
    %c0_1 = arith.constant 0 : index
    %c0_2 = arith.constant 0 : index
    %c0_3 = arith.constant 0 : index
    %2 = vector.load %arg1[%c0_1, %c0_2, %c0_3] : memref<1x4x256xf32, #tpu.memory_space<vmem>>, vector<1x4x256xf32>
    %3 = vector.shape_cast %2 : vector<1x4x256xf32> to vector<4x256xf32>
    %c0_4 = arith.constant 0 : index
    %c128 = arith.constant 128 : index
    %4 = vector.load %arg5[%c0_4, %c128] : memref<4x512xf32, #tpu.memory_space<vmem>>, vector<4x256xf32>
    tpu.vector_store %arg5[%c0_4, %c128], %3 {strides = array<i32>} : memref<4x512xf32, #tpu.memory_space<vmem>>, vector<4x256xf32>,
    %5 = tpu.iota {dimensions = array<i32: 1>} : vector<4x256xi32>
    %c16_i32 = arith.constant 16 : i32
    %c0_i32 = arith.constant 0 : i32
    %6 = arith.cmpi eq, %c16_i32, %c0_i32 : i32
    %c1_i32 = arith.constant 1 : i32
    %7 = arith.select %6, %c1_i32, %c16_i32 : i32
    %8 = vector.broadcast %7 : i32 to vector<4x256xi32>
    %9 = arith.remsi %5, %8 : vector<4x256xi32>
    %c0_i32_5 = arith.constant 0 : i32
    %10 = vector.broadcast %c0_i32_5 : i32 to vector<4x256xi32>
    %11 = arith.cmpi ne, %9, %10 : vector<4x256xi32>
    %c0_i32_6 = arith.constant 0 : i32
    %12 = vector.broadcast %c0_i32_6 : i32 to vector<4x256xi32>
    %13 = arith.cmpi slt, %9, %12 : vector<4x256xi32>
    %c0_i32_7 = arith.constant 0 : i32
    %14 = arith.cmpi slt, %7, %c0_i32_7 : i32
    %15 = vector.broadcast %14 : i1 to vector<4x256xi1>
    %16 = vector.broadcast %15 : vector<4x256xi1> to vector<4x256xi1>
    %17 = arith.xori %13, %16 : vector<4x256xi1>
    %18 = arith.andi %17, %11 : vector<4x256xi1>
    %19 = vector.broadcast %7 : i32 to vector<4x256xi32>
    %20 = arith.addi %9, %19 : vector<4x256xi32>
    %21 = arith.select %18, %20, %9 : vector<4x256xi1>, vector<4x256xi32>
    %c0_8 = arith.constant 0 : index
    %c111 = arith.constant 111 : index
    %22 = vector.load %arg5[%c0_8, %c111] : memref<4x512xf32, #tpu.memory_space<vmem>>, vector<4x256xf32>
    %c1_i32_9 = arith.constant 1 : i32
    %23 = vector.broadcast %c1_i32_9 : i32 to vector<4x256xi32>
    %24 = arith.cmpi sge, %21, %23 : vector<4x256xi32>
    %cst_10 = arith.constant 0.000000e+00 : f32
    %25 = vector.broadcast %cst_10 : f32 to vector<4x256xf32>
    %26 = arith.select %24, %22, %25 : vector<4x256xi1>, vector<4x256xf32>
    %c0_11 = arith.constant 0 : index
    %c0_12 = arith.constant 0 : index
    %27 = vector.load %arg6[%c0_11, %c0_12] : memref<36x256xf32, #tpu.memory_space<vmem>>, vector<4x256xf32>
    tpu.vector_store %arg6[%c0_11, %c0_12], %26 {strides = array<i32>} : memref<36x256xf32, #tpu.memory_space<vmem>>, vector<4x256xf32>,
    %c0_13 = arith.constant 0 : index
    %c112 = arith.constant 112 : index
    %28 = vector.load %arg5[%c0_13, %c112] : memref<4x512xf32, #tpu.memory_space<vmem>>, vector<4x256xf32>
    %c4 = arith.constant 4 : index
    %c0_14 = arith.constant 0 : index
    %29 = vector.load %arg6[%c4, %c0_14] : memref<36x256xf32, #tpu.memory_space<vmem>>, vector<4x256xf32>
    tpu.vector_store %arg6[%c4, %c0_14], %28 {strides = array<i32>} : memref<36x256xf32, #tpu.memory_space<vmem>>, vector<4x256xf32>,
    %c0_15 = arith.constant 0 : index
    %c113 = arith.constant 113 : index
    %30 = vector.load %arg5[%c0_15, %c113] : memref<4x512xf32, #tpu.memory_space<vmem>>, vector<4x256xf32>
    %c15_i32 = arith.constant 15 : i32
    %31 = vector.broadcast %c15_i32 : i32 to vector<4x256xi32>
    %32 = arith.cmpi slt, %21, %31 : vector<4x256xi32>
    %cst_16 = arith.constant 0.000000e+00 : f32
    %33 = vector.broadcast %cst_16 : f32 to vector<4x256xf32>
    %34 = arith.select %32, %30, %33 : vector<4x256xi1>, vector<4x256xf32>
    %c8 = arith.constant 8 : index
    %c0_17 = arith.constant 0 : index
    %35 = vector.load %arg6[%c8, %c0_17] : memref<36x256xf32, #tpu.memory_space<vmem>>, vector<4x256xf32>
    tpu.vector_store %arg6[%c8, %c0_17], %34 {strides = array<i32>} : memref<36x256xf32, #tpu.memory_space<vmem>>, vector<4x256xf32>,
    %c0_18 = arith.constant 0 : index
    %c127 = arith.constant 127 : index
    %36 = vector.load %arg5[%c0_18, %c127] : memref<4x512xf32, #tpu.memory_space<vmem>>, vector<4x256xf32>
    %c1_i32_19 = arith.constant 1 : i32
    %37 = vector.broadcast %c1_i32_19 : i32 to vector<4x256xi32>
    %38 = arith.cmpi sge, %21, %37 : vector<4x256xi32>
    %cst_20 = arith.constant 0.000000e+00 : f32
    %39 = vector.broadcast %cst_20 : f32 to vector<4x256xf32>
    %40 = arith.select %38, %36, %39 : vector<4x256xi1>, vector<4x256xf32>
    %c12 = arith.constant 12 : index
    %c0_21 = arith.constant 0 : index
    %41 = vector.load %arg6[%c12, %c0_21] : memref<36x256xf32, #tpu.memory_space<vmem>>, vector<4x256xf32>
    tpu.vector_store %arg6[%c12, %c0_21], %40 {strides = array<i32>} : memref<36x256xf32, #tpu.memory_space<vmem>>, vector<4x256xf32>,
    %c0_22 = arith.constant 0 : index
    %c128_23 = arith.constant 128 : index
    %42 = vector.load %arg5[%c0_22, %c128_23] : memref<4x512xf32, #tpu.memory_space<vmem>>, vector<4x256xf32>
    %c16 = arith.constant 16 : index
    %c0_24 = arith.constant 0 : index
    %43 = vector.load %arg6[%c16, %c0_24] : memref<36x256xf32, #tpu.memory_space<vmem>>, vector<4x256xf32>
    tpu.vector_store %arg6[%c16, %c0_24], %42 {strides = array<i32>} : memref<36x256xf32, #tpu.memory_space<vmem>>, vector<4x256xf32>,
    %c0_25 = arith.constant 0 : index
    %c129 = arith.constant 129 : index
    %44 = vector.load %arg5[%c0_25, %c129] : memref<4x512xf32, #tpu.memory_space<vmem>>, vector<4x256xf32>
    %c15_i32_26 = arith.constant 15 : i32
    %45 = vector.broadcast %c15_i32_26 : i32 to vector<4x256xi32>
    %46 = arith.cmpi slt, %21, %45 : vector<4x256xi32>
    %cst_27 = arith.constant 0.000000e+00 : f32
    %47 = vector.broadcast %cst_27 : f32 to vector<4x256xf32>
    %48 = arith.select %46, %44, %47 : vector<4x256xi1>, vector<4x256xf32>
    %c20 = arith.constant 20 : index
    %c0_28 = arith.constant 0 : index
    %49 = vector.load %arg6[%c20, %c0_28] : memref<36x256xf32, #tpu.memory_space<vmem>>, vector<4x256xf32>
    tpu.vector_store %arg6[%c20, %c0_28], %48 {strides = array<i32>} : memref<36x256xf32, #tpu.memory_space<vmem>>, vector<4x256xf32>,
    %c0_29 = arith.constant 0 : index
    %c143 = arith.constant 143 : index
    %50 = vector.load %arg5[%c0_29, %c143] : memref<4x512xf32, #tpu.memory_space<vmem>>, vector<4x256xf32>
    %c1_i32_30 = arith.constant 1 : i32
    %51 = vector.broadcast %c1_i32_30 : i32 to vector<4x256xi32>
    %52 = arith.cmpi sge, %21, %51 : vector<4x256xi32>
    %cst_31 = arith.constant 0.000000e+00 : f32
    %53 = vector.broadcast %cst_31 : f32 to vector<4x256xf32>
    %54 = arith.select %52, %50, %53 : vector<4x256xi1>, vector<4x256xf32>
    %c24 = arith.constant 24 : index
    %c0_32 = arith.constant 0 : index
    %55 = vector.load %arg6[%c24, %c0_32] : memref<36x256xf32, #tpu.memory_space<vmem>>, vector<4x256xf32>
    tpu.vector_store %arg6[%c24, %c0_32], %54 {strides = array<i32>} : memref<36x256xf32, #tpu.memory_space<vmem>>, vector<4x256xf32>,
    %c0_33 = arith.constant 0 : index
    %c144 = arith.constant 144 : index
    %56 = vector.load %arg5[%c0_33, %c144] : memref<4x512xf32, #tpu.memory_space<vmem>>, vector<4x256xf32>
    %c28 = arith.constant 28 : index
    %c0_34 = arith.constant 0 : index
    %57 = vector.load %arg6[%c28, %c0_34] : memref<36x256xf32, #tpu.memory_space<vmem>>, vector<4x256xf32>
    tpu.vector_store %arg6[%c28, %c0_34], %56 {strides = array<i32>} : memref<36x256xf32, #tpu.memory_space<vmem>>, vector<4x256xf32>,
    %c0_35 = arith.constant 0 : index
    %c145 = arith.constant 145 : index
    %58 = vector.load %arg5[%c0_35, %c145] : memref<4x512xf32, #tpu.memory_space<vmem>>, vector<4x256xf32>
    %c15_i32_36 = arith.constant 15 : i32
    %59 = vector.broadcast %c15_i32_36 : i32 to vector<4x256xi32>
    %60 = arith.cmpi slt, %21, %59 : vector<4x256xi32>
    %cst_37 = arith.constant 0.000000e+00 : f32
    %61 = vector.broadcast %cst_37 : f32 to vector<4x256xf32>
    %62 = arith.select %60, %58, %61 : vector<4x256xi1>, vector<4x256xf32>
    %c32 = arith.constant 32 : index
    %c0_38 = arith.constant 0 : index
    %63 = vector.load %arg6[%c32, %c0_38] : memref<36x256xf32, #tpu.memory_space<vmem>>, vector<4x256xf32>
    tpu.vector_store %arg6[%c32, %c0_38], %62 {strides = array<i32>} : memref<36x256xf32, #tpu.memory_space<vmem>>, vector<4x256xf32>,
    %c0_39 = arith.constant 0 : index
    %c0_40 = arith.constant 0 : index
    %64 = vector.load %arg2[%c0_39, %c0_40] : memref<8x36xf32, #tpu.memory_space<vmem>>, vector<8x36xf32>
    %c0_41 = arith.constant 0 : index
    %c0_42 = arith.constant 0 : index
    %65 = vector.load %arg6[%c0_41, %c0_42] : memref<36x256xf32, #tpu.memory_space<vmem>>, vector<36x256xf32>
    %cst_43 = arith.constant dense<0.000000e+00> : vector<8x256xf32>
    %66 = tpu.matmul %64, %65, %cst_43 {dimension_numbers = #tpu.dot_dimension_numbers<[1], [0], [0], [1], [0, 0, 1, 1], [], []>} : vector<8x36xf32>, vector<36x256xf32>, vector<8x256xf32> -> vector<8x256xf32>
    %c0_44 = arith.constant 0 : index
    %c0_45 = arith.constant 0 : index
    %67 = vector.load %arg3[%c0_44, %c0_45] : memref<8x1xf32, #tpu.memory_space<vmem>>, vector<8x1xf32>
    %68 = vector.broadcast %67 : vector<8x1xf32> to vector<8x256xf32>
    %69 = arith.addf %66, %68 : vector<8x256xf32>
    %cst_46 = arith.constant 0.000000e+00 : f32
    %70 = vector.broadcast %cst_46 : f32 to vector<8x256xf32>
    %71 = arith.maximumf %69, %70 : vector<8x256xf32>
    %72 = vector.shape_cast %71 : vector<8x256xf32> to vector<1x8x256xf32>
    %c0_47 = arith.constant 0 : index
    %c0_48 = arith.constant 0 : index
    %c0_49 = arith.constant 0 : index
    %73 = vector.load %arg4[%c0_47, %c0_48, %c0_49] : memref<1x8x256xf32, #tpu.memory_space<vmem>>, vector<1x8x256xf32>
    tpu.vector_store %arg4[%c0_47, %c0_48, %c0_49], %72 {strides = array<i32>} : memref<1x8x256xf32, #tpu.memory_space<vmem>>, vector<1x8x256xf32>,
    return
  }
  func.func @transform_0(%arg0: i32) -> (i32, i32, i32) {
    %c0_i32 = arith.constant 0 : i32
    %c0_i32_0 = arith.constant 0 : i32
    %c0_i32_1 = arith.constant 0 : i32
    return %arg0, %c0_i32, %c0_i32_0 : i32, i32, i32
  }
  func.func @transform_1(%arg0: i32) -> (i32, i32) {
    %c0_i32 = arith.constant 0 : i32
    %c0_i32_0 = arith.constant 0 : i32
    %c0_i32_1 = arith.constant 0 : i32
    return %c0_i32, %c0_i32_0 : i32, i32
  }
  func.func @transform_2(%arg0: i32) -> (i32, i32) {
    %c0_i32 = arith.constant 0 : i32
    %c0_i32_0 = arith.constant 0 : i32
    %c0_i32_1 = arith.constant 0 : i32
    return %c0_i32, %c0_i32_0 : i32, i32
  }
  func.func @transform_3(%arg0: i32) -> (i32, i32, i32) {
    %c0_i32 = arith.constant 0 : i32
    %c0_i32_0 = arith.constant 0 : i32
    %c0_i32_1 = arith.constant 0 : i32
    return %arg0, %c0_i32, %c0_i32_0 : i32, i32, i32
  }
}

</mosaic_0001>

<llo_original>
// kernel: tpu_custom_call.1
$region0: #{tpu_custom_call.1}
  #allocation0 [shape = 'u32[]', space=smem, size = 0x4, offset = 0x4, fixed_abs, tag = 'smem constant byte address 0x4 - core index']
  #allocation1 [shape = 'u32[144,128]{1,0:T(1,128)}', space=vmem, size = 0x12000, scoped, tag = 'internal scratch']
  #allocation2 [shape = 'f32[4,512]{1,0:T(4,128)}', space=vmem, size = 0x2000, scoped, tag = 'scratch operand']
  #allocation3 [shape = 'f32[36,256]{1,0:T(8,128)}', space=vmem, size = 0xa000, scoped, tag = 'scratch operand']
  %s0 = inlined_call_operand.hbm [shape: f32[2,4,256], index: 0, kind: input, shape index: {}]
  %s1 = inlined_call_operand.vmem [shape: f32[8,36], index: 1, kind: input, shape index: {}]
  %s2 = inlined_call_operand.vmem [shape: f32[8,1], index: 2, kind: input, shape index: {}]
  %s3 = inlined_call_operand.hbm [shape: f32[2,8,256], index: 3, kind: output, shape index: {}]
  %s4 = sld [smem:[#allocation0]]
  $region49: #{tpu_custom_call.1} parent=0
    _
  %s6 = ssub.s32 1, %s4
  %s7 = scalar_select 0, %s6, %s4
  $region1: #{tpu_custom_call.1} parent=0
    #allocation4 [shape = 'u8[8192]{0}', space=vmem, size = 0x2000, scoped, tag = 'input window, operand 0']
    #allocation5 [shape = 's32[2]{0}', space=sflag, size = 0x8, scoped, tag = 'scoped memory for tpu_custom_call.1']
    #allocation6 [shape = 's32[2]{0}', space=sflag, size = 0x8, scoped, tag = 'scoped memory for tpu_custom_call.1']
    #allocation7 [shape = 'u8[16384]{0}', space=vmem, size = 0x4000, scoped, tag = 'output window, operand 0']
    %8 = vsyncpa [#allocation5], 0
    %s9 = scalar_lea.sflag [#allocation5], 1
    %10 = vsyncpa %s9, 0
    %11 = vsyncpa [#allocation6], 0
    %s12 = scalar_lea.sflag [#allocation6], 1
    %13 = vsyncpa %s12, 0
    loop: start=0, step=1, limit=4
    $region2: #{tpu_custom_call.1} parent=1 // loop_pre_header
      _
    $region3: #{tpu_custom_call.1} parent=1 // loop_header
      %s15 = sphi 0, %s19
      %p16 = scmp.ge.s32.totalorder %s15, 4
      %s25 = sphi 0, %s27
      %s28 = sphi 0, %s25
      %s29 = sphi 0, %s28
      %s45 = sphi 0, %s29
      %s49 = sphi 0, %s49
      %s51 = sphi 0, %s49
      %s52 = sphi 0, %s51
      %s66 = sphi 0, %s52
      %s70 = sphi 0, %s70
      %s72 = sphi 0, %s70
      %s73 = sphi 0, %s72
      %s87 = sphi 0, %s73
      %s93 = sphi 0, %s95
      %s96 = sphi 0, %s93
      %s97 = sphi 0, %s96
      %s113 = sphi 0, %s97
    $region4: #{tpu_custom_call.1} parent=1 // loop_header_branch
      %18 = sbr.rel (%p16) target = $region8
    $region5: #{tpu_custom_call.1} parent=1 // loop_body
      %s20 = ssub.s32 %s15, 1
      %s21 = ssub.s32 %s15, 2
      %s22 = sadd.s32 %s15, 1
      %s23 = ssub.s32 %s15, %s22
      %p24 = scmp.eq.s32.totalorder %s23, 0
      %s26 = sadd.s32 %s25, 1
      %s27 = scalar_select %p24, %s25, %s26
      %p30 = pneg %p24
      %p31 = scmp.eq.s32.totalorder %s15, 1
      %p32 = por %p30, %p31
      %p33 = scmp.ne.s32.totalorder %s25, %s28
      %p34 = scmp.eq.s32.totalorder %s15, 0
      %p35 = por %p33, %p34
      %p36 = scmp.ne.s32.totalorder %s25, %s28
      %p37 = scmp.eq.s32.totalorder %s20, 1
      %p38 = por %p36, %p37
      %p39 = scmp.ne.s32.totalorder %s28, %s29
      %p40 = scmp.eq.s32.totalorder %s20, 0
      %p41 = por %p39, %p40
      %p42 = scmp.ne.s32.totalorder %s28, %s29
      %p43 = scmp.eq.s32.totalorder %s21, 1
      %p44 = por %p42, %p43
      %p46 = scmp.ne.s32.totalorder %s29, %s45
      %p47 = scmp.eq.s32.totalorder %s21, 0
      %p48 = por %p46, %p47
      %s50 = sadd.s32 %s49, 1
      %p53 = scmp.eq.s32.totalorder %s15, 1
      %p54 = scmp.ne.s32.totalorder %s49, %s51
      %p55 = scmp.eq.s32.totalorder %s15, 0
      %p56 = por %p54, %p55
      %p57 = scmp.ne.s32.totalorder %s49, %s51
      %p58 = scmp.eq.s32.totalorder %s20, 1
      %p59 = por %p57, %p58
      %p60 = scmp.ne.s32.totalorder %s51, %s52
      %p61 = scmp.eq.s32.totalorder %s20, 0
      %p62 = por %p60, %p61
      %p63 = scmp.ne.s32.totalorder %s51, %s52
      %p64 = scmp.eq.s32.totalorder %s21, 1
      %p65 = por %p63, %p64
      %p67 = scmp.ne.s32.totalorder %s52, %s66
      %p68 = scmp.eq.s32.totalorder %s21, 0
      %p69 = por %p67, %p68
      %s71 = sadd.s32 %s70, 1
      %p74 = scmp.eq.s32.totalorder %s15, 1
      %p75 = scmp.ne.s32.totalorder %s70, %s72
      %p76 = scmp.eq.s32.totalorder %s15, 0
      %p77 = por %p75, %p76
      %p78 = scmp.ne.s32.totalorder %s70, %s72
      %p79 = scmp.eq.s32.totalorder %s20, 1
      %p80 = por %p78, %p79
      %p81 = scmp.ne.s32.totalorder %s72, %s73
      %p82 = scmp.eq.s32.totalorder %s20, 0
      %p83 = por %p81, %p82
      %p84 = scmp.ne.s32.totalorder %s72, %s73
      %p85 = scmp.eq.s32.totalorder %s21, 1
      %p86 = por %p84, %p85
      %p88 = scmp.ne.s32.totalorder %s73, %s87
      %p89 = scmp.eq.s32.totalorder %s21, 0
      %p90 = por %p88, %p89
      %s91 = ssub.s32 %s15, %s22
      %p92 = scmp.eq.s32.totalorder %s91, 0
      %s94 = sadd.s32 %s93, 1
      %s95 = scalar_select %p92, %s93, %s94
      %p98 = pneg %p92
      %p99 = scmp.eq.s32.totalorder %s15, 1
      %p100 = por %p98, %p99
      %p101 = scmp.ne.s32.totalorder %s93, %s96
      %p102 = scmp.eq.s32.totalorder %s15, 0
      %p103 = por %p101, %p102
      %p104 = scmp.ne.s32.totalorder %s93, %s96
      %p105 = scmp.eq.s32.totalorder %s20, 1
      %p106 = por %p104, %p105
      %p107 = scmp.ne.s32.totalorder %s96, %s97
      %p108 = scmp.eq.s32.totalorder %s20, 0
      %p109 = por %p107, %p108
      %p110 = scmp.ne.s32.totalorder %s96, %s97
      %p111 = scmp.eq.s32.totalorder %s21, 1
      %p112 = por %p110, %p111
      %p114 = scmp.ne.s32.totalorder %s97, %s113
      %p115 = scmp.eq.s32.totalorder %s21, 0
      %p116 = por %p114, %p115
      %p117 = scmp.le.s32.totalorder 1, %s15
      %p118 = scmp.lt.s32.totalorder %s15, 3
      %p119 = pnand %p117, %p118
      %p120 = pneg %p119
      // Predicated region
      $region9: #{tpu_custom_call.1} parent=5 // pred_check
        _
      $region10: #{tpu_custom_call.1} parent=5 // pred_check_branch
        %122 = sbr.rel (%p119) target = $region12
      $region11: #{tpu_custom_call.1} parent=5 // pred_region
        %s123 = ssub.s32 %s15, 1
        // Predicated region
        $region13: #{tpu_custom_call.1} parent=11 // pred_check
          %p124 = pneg %p62
        $region14: #{tpu_custom_call.1} parent=11 // pred_check_branch
          %126 = sbr.rel (%p124) target = $region16
        $region15: #{tpu_custom_call.1} parent=11 // pred_region
          _
        $region16: #{tpu_custom_call.1} parent=11 // pred_fallthru
          _
        // Predicated region
        $region17: #{tpu_custom_call.1} parent=11 // pred_check
          %p127 = pneg %p83
        $region18: #{tpu_custom_call.1} parent=11 // pred_check_branch
          %129 = sbr.rel (%p127) target = $region20
        $region19: #{tpu_custom_call.1} parent=11 // pred_region
          _
        $region20: #{tpu_custom_call.1} parent=11 // pred_fallthru
          _
      $region12: #{tpu_custom_call.1} parent=5 // pred_fallthru
        _
      %p130 = scmp.lt.s32.totalorder %s15, 2
      // Predicated region
      $region21: #{tpu_custom_call.1} parent=5 // pred_check
        %p131 = pneg %p130
      $region22: #{tpu_custom_call.1} parent=5 // pred_check_branch
        %133 = sbr.rel (%p131) target = $region24
      $region23: #{tpu_custom_call.1} parent=5 // pred_region
        // Predicated region
        $region25: #{tpu_custom_call.1} parent=23 // pred_check
          %p134 = pneg %p35
        $region26: #{tpu_custom_call.1} parent=23 // pred_check_branch
          %136 = sbr.rel (%p134) target = $region28
        $region27: #{tpu_custom_call.1} parent=23 // pred_region
          %s137 = sand.u32 %s25, 1
          %s138 = scalar_lea.sflag [#allocation5], %s137
          %s139 = sand.u32 %s25, 1
          %s140 = smul.addr %s139, 8
          %s141 = scalar_lea.vmem [#allocation4], %s140
          %s143 = ssub.s32 128, 128
          %144 = vsyncadd %s138, %s143
          %s145 = smul.addr %s15, 2
          %s146 = smul.addr %s145, 64
          %s147 = scalar_lea.hbm %s0, %s146
          %s149 = sshll.u32 %s141, 4
          %s150 = int_to_ptr.vmem [resolvable:$true] %s149
          %152 = dma.hbm_to_vmem [thread:$0]  %s147, 128, %s150, %s138
        $region28: #{tpu_custom_call.1} parent=23 // pred_fallthru
          _
      $region24: #{tpu_custom_call.1} parent=5 // pred_fallthru
        _
      %p153 = scmp.le.s32.totalorder 1, %s15
      %p154 = scmp.lt.s32.totalorder %s15, 3
      %p155 = pnand %p153, %p154
      %p156 = pneg %p155
      // Predicated region
      $region29: #{tpu_custom_call.1} parent=5 // pred_check
        _
      $region30: #{tpu_custom_call.1} parent=5 // pred_check_branch
        %158 = sbr.rel (%p155) target = $region32
      $region31: #{tpu_custom_call.1} parent=5 // pred_region
        %s159 = ssub.s32 %s15, 1
        %s160 = sand.u32 %s28, 1
        %s161 = scalar_lea.sflag [#allocation5], %s160
        %s162 = sand.u32 %s28, 1
        %s163 = smul.addr %s162, 8
        %s164 = scalar_lea.vmem [#allocation4], %s163
        // Predicated region
        $region33: #{tpu_custom_call.1} parent=31 // pred_check
          %p165 = pneg %p41
        $region34: #{tpu_custom_call.1} parent=31 // pred_check_branch
          %167 = sbr.rel (%p165) target = $region36
        $region35: #{tpu_custom_call.1} parent=31 // pred_region
          %168 = dma.done %s161, 128
        $region36: #{tpu_custom_call.1} parent=31 // pred_fallthru
          _
        %s169 = sand.u32 %s28, 1
        %s170 = scalar_lea.sflag [#allocation5], %s169
        %s171 = sand.u32 %s28, 1
        %s172 = smul.addr %s171, 8
        %s173 = scalar_lea.vmem [#allocation4], %s172
        %p174 = pneg %p41
        %p175 = pneg %p38
        %p176 = pneg %p62
        %p177 = pneg %p59
        %p178 = pneg %p83
        %p179 = pneg %p80
        %p180 = pneg %p109
        %p181 = pneg %p106
        %s182 = sand.u32 %s96, 1
        %s183 = scalar_lea.sflag [#allocation6], %s182
        %s184 = sand.u32 %s96, 1
        %s185 = smul.addr %s184, 16
        %s186 = scalar_lea.vmem [#allocation7], %s185
        %187 = vst [vmem:[#allocation2] sm:$0xff] 0.0
        %188 = vst [vmem:[#allocation2 + $0x8] sm:$0xff] 0.0
        %v189 = vld [vmem:[%s164] sm:$0xff]
        %190 = vst [vmem:[#allocation2 + $0x4] sm:$0xff] %v189
        %v191 = vlaneseq
        %v192 = vand.u32 %v191, 127
        %v193 = vadd.s32 %v192, 128
        %vm194 = vcmp.lt.s32.totalorder %v192, 0
        %v195 = vsub.s32 0, %v192
        %v196 = vsel %vm194, %v195, %v192
        %v197 = vshrl.u32 %v196, 4
        %v198 = vand.u32 %v196, 15
        %v199 = vsub.s32 0, %v198
        %v200 = vsel %vm194, %v199, %v198
        %vm201 = vcmp.lt.s32.totalorder %v193, 0
        %v202 = vsub.s32 0, %v193
        %v203 = vsel %vm201, %v202, %v193
        %v204 = vshrl.u32 %v203, 4
        %v205 = vand.u32 %v203, 15
        %v206 = vsub.s32 0, %v205
        %v207 = vsel %vm201, %v206, %v205
        %vm208 = vcmp.ne.s32.totalorder %v200, 0
        %vm209 = vcmp.ne.s32.totalorder %v207, 0
        %vm210 = vcmp.lt.s32.totalorder %v200, 0
        %vm211 = vcmp.lt.s32.totalorder %v207, 0
        %vm212 = vmand %vm210, %vm208
        %vm213 = vmand %vm211, %vm209
        %v214 = vadd.s32 %v200, 16
        %v215 = vadd.s32 %v207, 16
        %v216 = vsel %vm212, %v214, %v200
        %v217 = vsel %vm213, %v215, %v207
        %v218 = vld [vmem:[#allocation2] sm:$0xff]
        %v219 = vld [vmem:[#allocation2 + $0x8] sm:$0xf]
        %vm220 = vcmp.ge.s32.totalorder %v216, 1
        %vm221 = vcmp.ge.s32.totalorder %v217, 1
        %v224 = vcombine.high %v218, %v218
        %225 = vrot.lane.b32.xlu0 %v218, 17
        %v226 = vpop.permute.xlu0 %225
        %227 = vrot.lane.b32.xlu0 %v224, 17
        %v228 = vpop.permute.xlu0 %227
        %229 = vrot.lane.b32.xlu0 %v219, 17
        %v230 = vpop.permute.xlu0 %229
        %vm231 = vcmask 138240
        %v232 = vsel %vm231, %v226, %v228
        %v233 = vsel %vm231, %v228, %v230
        %v236 = vsel %vm220, %v232, 0.0
        %v237 = vsel %vm221, %v233, 0.0
        %238 = vst [vmem:[#allocation3] sm:$0xf] %v236
        %239 = vst [vmem:[#allocation3 + $0x8] sm:$0xf] %v237
        %v240 = vld [vmem:[#allocation2] sm:$0xff]
        %v241 = vld [vmem:[#allocation2 + $0x8] sm:$0xf]
        %v244 = vcombine.low %v240, %v240
        %v245 = vcombine.low %v241, %v241
        %246 = vrot.lane.b32.xlu0 %v244, 16
        %v247 = vpop.permute.xlu0 %246
        %248 = vrot.lane.b32.xlu0 %v240, 16
        %v249 = vpop.permute.xlu0 %248
        %250 = vrot.lane.b32.xlu0 %v245, 16
        %v251 = vpop.permute.xlu0 %250
        %vm252 = vcmask 130048
        %v253 = vsel %vm252, %v247, %v249
        %v254 = vsel %vm252, %v249, %v251
        %257 = vst [vmem:[#allocation3] sm:$0xf0] %v253
        %258 = vst [vmem:[#allocation3 + $0x8] sm:$0xf0] %v254
        %v259 = vld [vmem:[#allocation2] sm:$0xff]
        %v260 = vld [vmem:[#allocation2 + $0x8] sm:$0xf]
        %vm261 = vcmp.lt.s32.totalorder %v216, 15
        %vm262 = vcmp.lt.s32.totalorder %v217, 15
        %v265 = vcombine.high %v259, %v259
        %266 = vrot.lane.b32.xlu0 %v259, 15
        %v267 = vpop.permute.xlu0 %266
        %268 = vrot.lane.b32.xlu0 %v265, 15
        %v269 = vpop.permute.xlu0 %268
        %270 = vrot.lane.b32.xlu0 %v260, 15
        %v271 = vpop.permute.xlu0 %270
        %vm272 = vcmask 121856
        %v273 = vsel %vm272, %v267, %v269
        %v274 = vsel %vm272, %v269, %v271
        %v277 = vsel %vm261, %v273, 0.0
        %v278 = vsel %vm262, %v274, 0.0
        %279 = vst [vmem:[#allocation3 + $0x10] sm:$0xf] %v277
        %280 = vst [vmem:[#allocation3 + $0x18] sm:$0xf] %v278
        %v281 = vld [vmem:[#allocation2] sm:$0xff]
        %v282 = vld [vmem:[#allocation2 + $0x8] sm:$0xf]
        %v285 = vcombine.high %v281, %v281
        %286 = vrot.lane.b32.xlu0 %v281, 1
        %v287 = vpop.permute.xlu0 %286
        %288 = vrot.lane.b32.xlu0 %v285, 1
        %v289 = vpop.permute.xlu0 %288
        %290 = vrot.lane.b32.xlu0 %v282, 1
        %v291 = vpop.permute.xlu0 %290
        %vm292 = vcmask 7168
        %v293 = vsel %vm292, %v287, %v289
        %v294 = vsel %vm292, %v289, %v291
        %v297 = vsel %vm220, %v293, 0.0
        %v298 = vsel %vm221, %v294, 0.0
        %v301 = vrot.slane %v297, 4
        %v302 = vrot.slane %v298, 4
        %305 = vst [vmem:[#allocation3 + $0x10] sm:$0xf0] %v301
        %306 = vst [vmem:[#allocation3 + $0x18] sm:$0xf0] %v302
        %v307 = vld [vmem:[#allocation2 + $0x4] sm:$0xff]
        %v309 = vcombine.high %v307, %v307
        %311 = vst [vmem:[#allocation3 + $0x20] sm:$0xf] %v307
        %312 = vst [vmem:[#allocation3 + $0x28] sm:$0xf] %v309
        %v313 = vld [vmem:[#allocation2 + $0x4] sm:$0xff]
        %v314 = vld [vmem:[#allocation2 + $0xc] sm:$0xf]
        %v317 = vcombine.high %v313, %v313
        %318 = vrot.lane.b32.xlu0 %v313, 127
        %v319 = vpop.permute.xlu0 %318
        %320 = vrot.lane.b32.xlu0 %v317, 127
        %v321 = vpop.permute.xlu0 %320
        %322 = vrot.lane.b32.xlu0 %v314, 127
        %v323 = vpop.permute.xlu0 %322
        %vm324 = vcmask 1039360
        %v325 = vsel %vm324, %v319, %v321
        %v326 = vsel %vm324, %v321, %v323
        %v329 = vsel %vm261, %v325, 0.0
        %v330 = vsel %vm262, %v326, 0.0
        %v333 = vrot.slane %v329, 4
        %v334 = vrot.slane %v330, 4
        %337 = vst [vmem:[#allocation3 + $0x20] sm:$0xf0] %v333
        %338 = vst [vmem:[#allocation3 + $0x28] sm:$0xf0] %v334
        %v339 = vld [vmem:[#allocation2 + $0x4] sm:$0xff]
        %v340 = vld [vmem:[#allocation2 + $0xc] sm:$0xf]
        %v343 = vcombine.high %v339, %v339
        %344 = vrot.lane.b32.xlu0 %v339, 113
        %v345 = vpop.permute.xlu0 %344
        %346 = vrot.lane.b32.xlu0 %v343, 113
        %v347 = vpop.permute.xlu0 %346
        %348 = vrot.lane.b32.xlu0 %v340, 113
        %v349 = vpop.permute.xlu0 %348
        %vm350 = vcmask 924672
        %v351 = vsel %vm350, %v345, %v347
        %v352 = vsel %vm350, %v347, %v349
        %v355 = vsel %vm220, %v351, 0.0
        %v356 = vsel %vm221, %v352, 0.0
        %357 = vst [vmem:[#allocation3 + $0x30] sm:$0xf] %v355
        %358 = vst [vmem:[#allocation3 + $0x38] sm:$0xf] %v356
        %v359 = vld [vmem:[#allocation2 + $0x4] sm:$0xff]
        %v360 = vld [vmem:[#allocation2 + $0xc] sm:$0xf]
        %v363 = vcombine.low %v359, %v359
        %v364 = vcombine.low %v360, %v360
        %365 = vrot.lane.b32.xlu0 %v363, 112
        %v366 = vpop.permute.xlu0 %365
        %367 = vrot.lane.b32.xlu0 %v359, 112
        %v368 = vpop.permute.xlu0 %367
        %369 = vrot.lane.b32.xlu0 %v364, 112
        %v370 = vpop.permute.xlu0 %369
        %vm371 = vcmask 916480
        %v372 = vsel %vm371, %v366, %v368
        %v373 = vsel %vm371, %v368, %v370
        %376 = vst [vmem:[#allocation3 + $0x30] sm:$0xf0] %v372
        %377 = vst [vmem:[#allocation3 + $0x38] sm:$0xf0] %v373
        %v378 = vld [vmem:[#allocation2 + $0x4] sm:$0xff]
        %v379 = vld [vmem:[#allocation2 + $0xc] sm:$0xf]
        %v382 = vcombine.high %v378, %v378
        %383 = vrot.lane.b32.xlu0 %v378, 111
        %v384 = vpop.permute.xlu0 %383
        %385 = vrot.lane.b32.xlu0 %v382, 111
        %v386 = vpop.permute.xlu0 %385
        %387 = vrot.lane.b32.xlu0 %v379, 111
        %v388 = vpop.permute.xlu0 %387
        %vm389 = vcmask 908288
        %v390 = vsel %vm389, %v384, %v386
        %v391 = vsel %vm389, %v386, %v388
        %v394 = vsel %vm261, %v390, 0.0
        %v395 = vsel %vm262, %v391, 0.0
        %396 = vst [vmem:[#allocation3 + $0x40] sm:$0xf] %v394
        %397 = vst [vmem:[#allocation3 + $0x48] sm:$0xf] %v395
        %v398 = vld [vmem:[%s1] sm:$0xff]
        %v399 = vld [vmem:[#allocation3] sm:$0xff]
        %v400 = vld [vmem:[#allocation3 + $0x8] sm:$0xff]
        %v401 = vld [vmem:[#allocation3 + $0x10] sm:$0xff]
        %v402 = vld [vmem:[#allocation3 + $0x18] sm:$0xff]
        %v403 = vld [vmem:[#allocation3 + $0x20] sm:$0xff]
        %v404 = vld [vmem:[#allocation3 + $0x28] sm:$0xff]
        %v405 = vld [vmem:[#allocation3 + $0x30] sm:$0xff]
        %v406 = vld [vmem:[#allocation3 + $0x38] sm:$0xff]
        %v407 = vld [vmem:[#allocation3 + $0x40] sm:$0xf]
        %v408 = vld [vmem:[#allocation3 + $0x48] sm:$0xf]
        %v409 = vld [vmem:[%s2] sm:$0xff]
        %411 = vset.pattern.permute.xlu0 0
        %412 = vperm.xlu0 %411, %v409
        %v413 = vpop.permute.xlu0 %412
        %vm415 = vcmask 293888
        %v417 = vsel %vm415, %v398, 0
        %vm419 = vcmask 1043456
        %v421 = vsel %vm419, %v407, 0
        %v424 = vsel %vm419, %v408, 0
        %426 = vmatprep.subr.mxu0 %v400
        %427 = vmatpush1.msra.mxu0 %v399
        %428 = vmatprep.subr.mxu0 %v402
        %429 = vmatpush1.msra.mxu0 %v401
        %430 = vmatprep.subr.mxu0 %v404
        %431 = vmatpush1.msra.mxu0 %v403
        %432 = vmatprep.subr.mxu0 %v406
        %433 = vmatpush1.msra.mxu0 %v405
        %434 = vmatprep.subr.mxu0 %v424
        %435 = vmatpush1.msra.mxu0 %v421
        %436 = vmatprep.subr.mxu0 0.0
        %437 = vmatpush1.msra.mxu0 0.0
        %438 = vmatprep.subr.mxu0 0.0
        %439 = vmatpush1.msra.mxu0 0.0
        %440 = vmatprep.subr.mxu0 0.0
        %441 = vmatpush1.msra.mxu0 0.0
        %442 = vmatprep.subr.mxu0 0.0
        %443 = vmatpush1.msra.mxu0 0.0
        %444 = vmatprep.subr.mxu0 0.0
        %445 = vmatpush1.msra.mxu0 0.0
        %446 = vmatprep.subr.mxu0 0.0
        %447 = vmatpush1.msra.mxu0 0.0
        %448 = vmatprep.subr.mxu0 0.0
        %449 = vmatpush1.msra.mxu0 0.0
        %450 = vmatprep.subr.mxu0 0.0
        %451 = vmatpush1.msra.mxu0 0.0
        %452 = vmatprep.subr.mxu0 0.0
        %453 = vmatpush1.msra.mxu0 0.0
        %454 = vmatprep.subr.mxu0 0.0
        %455 = vmatpush1.msra.mxu0 0.0
        %456 = vmatprep.subr.mxu0 0.0
        %457 = vmatpush1.msra.mxu0 0.0
        %458 = vmatprep.subr.mxu0 0.0
        %459 = vmatpush1.msra.mxu0 0.0
        %460 = vmatprep.subr.mxu0 0.0
        %461 = vmatpush1.msra.mxu0 0.0
        %462 = vmatprep.subr.mxu0 0.0
        %463 = vmatpush1.msra.mxu0 0.0
        %464 = vmatprep.subr.mxu0 0.0
        %465 = vmatpush1.msra.mxu0 0.0
        %466 = vmatprep.subr.mxu0 0.0
        %467 = vmatpush1.msra.mxu0 0.0
        %468 = vmatprep.subr.mxu0 0.0
        %469 = vmatpush1.msra.mxu0 0.0
        %470 = vmatprep.subr.mxu0 0.0
        %471 = vmatpush1.msra.mxu0 0.0
        %472 = vmatprep.subr.mxu0 0.0
        %473 = vmatpush1.msra.mxu0 0.0
        %474 = vmatprep.subr.mxu0 0.0
        %475 = vmatpush1.msra.mxu0 0.0
        %476 = vmatprep.subr.mxu0 0.0
        %477 = vmatpush1.msra.mxu0 0.0
        %478 = vmatprep.subr.mxu0 0.0
        %479 = vmatpush1.msra.mxu0 0.0
        %480 = vmatprep.subr.mxu0 0.0
        %481 = vmatpush1.msra.mxu0 0.0
        %482 = vmatprep.subr.mxu0 0.0
        %483 = vmatpush1.msra.mxu0 0.0
        %484 = vmatprep.subr.mxu0 0.0
        %485 = vmatpush1.msra.mxu0 0.0
        %486 = vmatprep.subr.mxu0 0.0
        %487 = vmatpush1.msra.mxu0 0.0
        %488 = vmatprep.subr.mxu0 0.0
        %489 = vmatpush1.msra.mxu0 0.0
        %490 = vmatprep.mubr.f32.mxu0 0.0
        %491 = vmatmul.mubr.f32.gmra.mrb[0].mxu0 %v417
        %v492 = vpop.f32.mrb[0].mxu0
        %v493 = vadd.f32 %v413, %v492
        %v494 = vpop.f32.mrb[0].mxu0
        %v495 = vadd.f32 %v413, %v494
        %496 = vdwg.mxu0
        %v497 = vmax.f32 %v493, 0.0
        %v498 = vmax.f32 %v495, 0.0
        %499 = vst [vmem:[%s186] sm:$0xff] %v497
        %500 = vst [vmem:[%s186 + $0x8] sm:$0xff] %v498
        %s501 = sand.u32 %s96, 1
        %s502 = scalar_lea.sflag [#allocation6], %s501
        %s503 = sand.u32 %s96, 1
        %s504 = smul.addr %s503, 16
        %s505 = scalar_lea.vmem [#allocation7], %s504
        // Predicated region
        $region37: #{tpu_custom_call.1} parent=31 // pred_check
          %p506 = pneg %p106
        $region38: #{tpu_custom_call.1} parent=31 // pred_check_branch
          %508 = sbr.rel (%p506) target = $region40
        $region39: #{tpu_custom_call.1} parent=31 // pred_region
          %s510 = ssub.s32 256, 256
          %511 = vsyncadd %s502, %s510
          %s512 = smul.addr %s20, 2
          %s513 = smul.addr %s512, 128
          %s514 = scalar_lea.hbm %s3, %s513
          %s516 = sshll.u32 %s505, 4
          %s517 = int_to_ptr.vmem [resolvable:$true] %s516
          %519 = dma.vmem_to_hbm [thread:$0]  %s517, 256, %s514, %s502
        $region40: #{tpu_custom_call.1} parent=31 // pred_fallthru
          _
      $region32: #{tpu_custom_call.1} parent=5 // pred_fallthru
        _
      %p520 = scmp.le.s32.totalorder 2, %s15
      // Predicated region
      $region41: #{tpu_custom_call.1} parent=5 // pred_check
        %p521 = pneg %p520
      $region42: #{tpu_custom_call.1} parent=5 // pred_check_branch
        %523 = sbr.rel (%p521) target = $region44
      $region43: #{tpu_custom_call.1} parent=5 // pred_region
        %s524 = ssub.s32 %s15, 2
        // Predicated region
        $region45: #{tpu_custom_call.1} parent=43 // pred_check
          %p525 = pneg %p112
        $region46: #{tpu_custom_call.1} parent=43 // pred_check_branch
          %527 = sbr.rel (%p525) target = $region48
        $region47: #{tpu_custom_call.1} parent=43 // pred_region
          %s528 = sand.u32 %s97, 1
          %s529 = scalar_lea.sflag [#allocation6], %s528
          %s530 = sand.u32 %s97, 1
          %s531 = smul.addr %s530, 16
          %s532 = scalar_lea.vmem [#allocation7], %s531
          %533 = dma.done %s529, 256
        $region48: #{tpu_custom_call.1} parent=43 // pred_fallthru
          _
      $region44: #{tpu_custom_call.1} parent=5 // pred_fallthru
        _
    $region6: #{tpu_custom_call.1} parent=1 // loop_footer
      %s19 = sadd.s32 1, %s15
    $region7: #{tpu_custom_call.1} parent=1 // loop_footer_branch
      %14 = sbr.rel target = $region3
    $region8: #{tpu_custom_call.1} parent=1 // loop_exit
      _
    %534 = vsyncpa [#allocation5], 1
    %s535 = scalar_lea.sflag [#allocation5], 1
    %536 = vsyncpa %s535, 1
    %537 = vsyncpa [#allocation6], 1
    %s538 = scalar_lea.sflag [#allocation6], 1
    %539 = vsyncpa %s538, 1

</llo_original>
